<compile_context>
chip_gen: v7x
topology: tpu7x:2x2x1
jax: 0.10.0
libtpu: 0.0.40
codegen_flags: <defaults>
</compile_context>

<pallas_src>
import math
from functools import partial

import jax
import jax.numpy as jnp
from jax import lax
from jax.experimental import pallas as pl
from jax.experimental.pallas import tpu as pltpu


# ----------------------------- tuning helpers -------------------------------

def _vmem_limit_bytes():
    """Scoped-VMEM budget, gated per generation (headroom on v7x's 64 MiB)."""
    try:
        cap = pltpu.get_tpu_info().vmem_capacity_bytes
        return int(min(cap - (16 << 20), 48 << 20))
    except Exception:
        return 32 << 20


def _is_v5e():
    try:
        kind = jax.devices()[0].device_kind.lower()
        return ("v5 lite" in kind) or ("v5e" in kind) or ("v5litepod" in kind)
    except Exception:
        return False


def _kv_tile_candidates():
    # v5e: 128-deep MXU + no bf16 VPU -> keep the (tq,tk) live tiles small.
    return (128,) if _is_v5e() else (256, 128)


def _pick_tile(dim, candidates):
    """Largest preferred tile dividing `dim`; full dim only when it is small."""
    for c in candidates:
        if c <= dim and dim % c == 0:
            return c
    if dim <= min(candidates):
        return dim  # small dim: a single full-extent block fits VMEM trivially
    raise ValueError(
        f"dimension {dim} is not divisible by any of {candidates}; "
        "pad the input to a 128-multiple before calling the kernel")


# ------------------------------- tiled linear --------------------------------

def _linear_kernel(x_ref, w_ref, b_ref, o_ref, acc_ref):
    k = pl.program_id(2)

    @pl.when(k == 0)
    def _init():
        acc_ref[...] = jnp.zeros_like(acc_ref)

    acc_ref[...] += jnp.dot(x_ref[...], w_ref[...],
                            preferred_element_type=jnp.float32)

    @pl.when(k == pl.num_programs(2) - 1)
    def _finalize():
        # Bias fused into the epilogue (added exactly once, on the last K step).
        o_ref[...] = (acc_ref[...] + b_ref[...]).astype(o_ref.dtype)


def _pallas_linear(x2d, w_t, b, *, out_dtype):
    """out = x2d @ w_t + b  (x2d: (M,K), w_t: (K,N) already transposed)."""
    M, K = x2d.shape
    Kw, N = w_t.shape
    assert K == Kw
    tm = _pick_tile(M, (512, 256, 128))
    tn = _pick_tile(N, (512, 256, 128))
    tk = _pick_tile(K, (512, 256, 128))
    b2 = b.reshape(1, N).astype(jnp.float32)

    return pl.pallas_call(
        _linear_kernel,
        out_shape=jax.ShapeDtypeStruct((M, N), out_dtype),
        grid_spec=pltpu.PrefetchScalarGridSpec(
            num_scalar_prefetch=0,
            grid=(M // tm, N // tn, K // tk),
            in_specs=[
                pl.BlockSpec((tm, tk), lambda i, j, k: (i, k)),
                pl.BlockSpec((tk, tn), lambda i, j, k: (k, j)),
                pl.BlockSpec((1, tn), lambda i, j, k: (0, j)),
            ],
            out_specs=pl.BlockSpec((tm, tn), lambda i, j, k: (i, j)),
            scratch_shapes=[pltpu.VMEM((tm, tn), jnp.float32)],
        ),
        compiler_params=pltpu.CompilerParams(
            dimension_semantics=("parallel", "parallel", "arbitrary"),
            vmem_limit_bytes=_vmem_limit_bytes(),
        ),
    )(x2d, w_t, b2)


# --------------------------- flash-style attention ---------------------------

def _flash_attn_kernel(q_ref, k_ref, v_ref, o_ref, m_ref, l_ref, acc_ref, *,
                       causal, block_q, block_k, q_axis, kv_axis, approx_recip):
    qi = pl.program_id(q_axis)
    ki = pl.program_id(kv_axis)

    @pl.when(ki == 0)
    def _init():
        m_ref[...] = jnp.full_like(m_ref, -jnp.inf)
        l_ref[...] = jnp.zeros_like(l_ref)
        acc_ref[...] = jnp.zeros_like(acc_ref)

    def _compute(apply_mask):
        # softmax scale is pre-folded into the Q projection weights/bias.
        q = q_ref[0]                                 # (bq, D), compute dtype
        k = k_ref[0]                                 # (bk, D)
        s = lax.dot_general(q, k, (((1,), (1,)), ((), ())),
                            preferred_element_type=jnp.float32)   # (bq, bk) f32
        if apply_mask:
            # Only tiles crossing the diagonal build the mask (additive -1e4
            # matches the PyTorch reference exactly).
            row = qi * block_q + lax.broadcasted_iota(jnp.int32, s.shape, 0)
            col = ki * block_k + lax.broadcasted_iota(jnp.int32, s.shape, 1)
            s = s + jnp.where(col > row, jnp.float32(-10000.0), jnp.float32(0.0))

        m_prev = m_ref[...]
        m_new = jnp.maximum(m_prev, jnp.max(s, axis=-1, keepdims=True))
        alpha = jnp.exp(m_prev - m_new)
        p = jnp.exp(s - m_new)
        l_ref[...] = alpha * l_ref[...] + jnp.sum(p, axis=-1, keepdims=True)
        # Probabilities cast to the (bf16) operand dtype before the PV matmul;
        # accumulation stays f32.
        acc_ref[...] = alpha * acc_ref[...] + jnp.dot(
            p.astype(v_ref.dtype), v_ref[0], preferred_element_type=jnp.float32)
        m_ref[...] = m_new

    if causal:
        visible = ki * block_k <= qi * block_q + (block_q - 1)      # not fully masked
        crosses = ki * block_k + (block_k - 1) > qi * block_q       # touches masked region

        @pl.when(jnp.logical_and(visible, crosses))
        def _masked():
            _compute(True)

        @pl.when(jnp.logical_not(crosses))
        def _unmasked():
            _compute(False)
        # fully masked tiles: no compute, and (thanks to the clamped KV
        # index_map) no DMA either.
    else:
        _compute(False)

    @pl.when(ki == pl.num_programs(kv_axis) - 1)
    def _finalize():
        # Normalize the (bq, D) accumulator after the PV matmul, on the EUP
        # when approx=True (bf16 path).
        inv_l = pl.reciprocal(l_ref[...], approx=approx_recip)
        o_ref[0] = (acc_ref[...] * inv_l).astype(o_ref.dtype)


def _flash_attention_fused(qkv, B, S, H, D, *, causal, out_dtype,
                           block_q=None, block_k=None, approx_recip=True):
    """q/k/v gathered straight from qkv:(B,S,3*H*D); output in (B,S,H*D)."""
    assert D % 128 == 0
    bq = block_q if block_q is not None else _pick_tile(S, (512, 256, 128))
    bk = block_k if block_k is not None else _pick_tile(S, _kv_tile_candidates())
    nq, nk = S // bq, S // bk

    def _kv_block(qi, ki):
        if causal:
            # Clamp to the last visible tile so fully-masked tiles re-use the
            # already-resident block (zero extra HBM traffic).
            return jnp.minimum(ki, (qi * bq + (bq - 1)) // bk)
        return ki

    # Feature-axis block index inside (three, h, d): q -> h, k -> H+h, v -> 2H+h.
    q_spec = pl.BlockSpec((1, bq, D), lambda b, h, qi, ki: (b, qi, h))
    k_spec = pl.BlockSpec((1, bk, D), lambda b, h, qi, ki: (b, _kv_block(qi, ki), H + h))
    v_spec = pl.BlockSpec((1, bk, D), lambda b, h, qi, ki: (b, _kv_block(qi, ki), 2 * H + h))
    o_spec = pl.BlockSpec((1, bq, D), lambda b, h, qi, ki: (b, qi, h))

    kern = partial(_flash_attn_kernel, causal=causal, block_q=bq, block_k=bk,
                   q_axis=2, kv_axis=3, approx_recip=approx_recip)
    return pl.pallas_call(
        kern,
        out_shape=jax.ShapeDtypeStruct((B, S, H * D), out_dtype),
        grid_spec=pltpu.PrefetchScalarGridSpec(
            num_scalar_prefetch=0,
            grid=(B, H, nq, nk),
            in_specs=[q_spec, k_spec, v_spec],
            out_specs=o_spec,
            scratch_shapes=[
                pltpu.VMEM((bq, 1), jnp.float32),   # running max
                pltpu.VMEM((bq, 1), jnp.float32),   # running denom
                pltpu.VMEM((bq, D), jnp.float32),   # output accumulator
            ],
        ),
        compiler_params=pltpu.CompilerParams(
            dimension_semantics=("parallel", "parallel", "parallel", "arbitrary"),
            vmem_limit_bytes=_vmem_limit_bytes(),
        ),
    )(qkv, qkv, qkv)


def _flash_attention_separate(q, k, v, *, causal, block_q=None, block_k=None,
                              approx_recip=True):
    """Fallback for head_dim % 128 != 0: q/k/v are (B*H, S, D) arrays."""
    BH, S, D = q.shape
    bq = block_q if block_q is not None else _pick_tile(S, (512, 256, 128))
    bk = block_k if block_k is not None else _pick_tile(S, _kv_tile_candidates())
    nq, nk = S // bq, S // bk

    def _kv_block(qi, ki):
        if causal:
            return jnp.minimum(ki, (qi * bq + (bq - 1)) // bk)
        return ki

    kern = partial(_flash_attn_kernel, causal=causal, block_q=bq, block_k=bk,
                   q_axis=1, kv_axis=2, approx_recip=approx_recip)
    return pl.pallas_call(
        kern,
        out_shape=jax.ShapeDtypeStruct((BH, S, D), q.dtype),
        grid_spec=pltpu.PrefetchScalarGridSpec(
            num_scalar_prefetch=0,
            grid=(BH, nq, nk),
            in_specs=[
                pl.BlockSpec((1, bq, D), lambda b, qi, ki: (b, qi, 0)),
                pl.BlockSpec((1, bk, D), lambda b, qi, ki: (b, _kv_block(qi, ki), 0)),
                pl.BlockSpec((1, bk, D), lambda b, qi, ki: (b, _kv_block(qi, ki), 0)),
            ],
            out_specs=pl.BlockSpec((1, bq, D), lambda b, qi, ki: (b, qi, 0)),
            scratch_shapes=[
                pltpu.VMEM((bq, 1), jnp.float32),
                pltpu.VMEM((bq, 1), jnp.float32),
                pltpu.VMEM((bq, D), jnp.float32),
            ],
        ),
        compiler_params=pltpu.CompilerParams(
            dimension_semantics=("parallel", "parallel", "arbitrary"),
            vmem_limit_bytes=_vmem_limit_bytes(),
        ),
    )(q, k, v)


# -------------------------------- module wrapper ------------------------------

class ParallelMHAPallas:
    """JAX/Pallas equivalent of ParallelMHA (single-device process group)."""

    def __init__(self, embed_dim, num_heads, *, causal=False, softmax_scale=None,
                 compute_dtype=jnp.bfloat16, attn_block_q=None, attn_block_k=None,
                 key=None):
        assert embed_dim % num_heads == 0
        self.embed_dim = embed_dim
        self.num_heads = num_heads
        self.head_dim = embed_dim // num_heads
        self.causal = causal
        self.softmax_scale = softmax_scale
        self.compute_dtype = compute_dtype
        self.attn_block_q = attn_block_q
        self.attn_block_k = attn_block_k

        key = jax.random.PRNGKey(0) if key is None else key
        k1, k2, k3, k4 = jax.random.split(key, 4)
        s = 1.0 / math.sqrt(embed_dim)
        # Master params kept in f32 (nn.Linear-shaped weights).
        self.Wqkv_w = jax.random.uniform(k1, (3 * embed_dim, embed_dim),
                                         jnp.float32, -s, s)
        self.Wqkv_b = jax.random.uniform(k2, (3 * embed_dim,), jnp.float32, -s, s)
        self.out_w = jax.random.uniform(k3, (embed_dim, embed_dim),
                                        jnp.float32, -s, s)
        self.out_b = jax.random.uniform(k4, (embed_dim,), jnp.float32, -s, s)

        # Fold the softmax scale into the Q rows of Wqkv (weight + bias) at
        # prep time — the attention kernel then never multiplies by the scale.
        scale = (softmax_scale if softmax_scale is not None
                 else 1.0 / math.sqrt(self.head_dim))
        wqkv_scaled = self.Wqkv_w.at[:embed_dim].multiply(scale)
        bqkv_scaled = self.Wqkv_b.at[:embed_dim].multiply(scale)
        # Pre-transposed (and optionally bf16-cast) copies consumed by kernels.
        self._Wqkv_wT = wqkv_scaled.T.astype(compute_dtype)
        self._Wqkv_b = bqkv_scaled                     # f32, fused in epilogue
        self._out_wT = self.out_w.T.astype(compute_dtype)

    def __call__(self, x, seqlen=None):
        # x: (B, S, E) if seqlen is None, else (B*S, E).
        if seqlen is None:
            B, S, E = x.shape
        else:
            BS, E = x.shape
            S = seqlen
            B = BS // S
        H, D = self.num_heads, self.head_dim
        cd = self.compute_dtype
        approx_recip = (cd != jnp.float32)   # exact reciprocal on the f32 path

        # --- Wqkv (ColumnParallelLinear): tiled matmul, bias + scale fused ---
        x2d = x.reshape(B * S, E).astype(cd)
        qkv = _pallas_linear(x2d, self._Wqkv_wT, self._Wqkv_b, out_dtype=cd)

        # --- inner_attn (SelfAttention): flash-style online-softmax kernel ---
        if D % 128 == 0:
            # No-transpose path: q/k/v blocks are gathered directly from the
            # (B, S, 3*H*D) projection output; context is written in (B,S,H*D).
            qkv3 = qkv.reshape(B, S, 3 * H * D)
            ctx2d = _flash_attention_fused(
                qkv3, B, S, H, D, causal=self.causal, out_dtype=cd,
                block_q=self.attn_block_q, block_k=self.attn_block_k,
                approx_recip=approx_recip).reshape(B * S, H * D)
        else:
            # TODO(synk): lane-tiling rules forbid D-wide feature blocks when
            # head_dim % 128 != 0 (e.g. D=64: pack two heads per block instead);
            # fall back to one fused transpose on qkv and one on ctx.
            qkv5 = qkv.reshape(B, S, 3, H, D).transpose(2, 0, 3, 1, 4)
            qkv5 = qkv5.reshape(3, B * H, S, D)
            ctx = _flash_attention_separate(
                qkv5[0], qkv5[1], qkv5[2], causal=self.causal,
                block_q=self.attn_block_q, block_k=self.attn_block_k,
                approx_recip=approx_recip)                       # (B*H, S, D)
            ctx2d = ctx.reshape(B, H, S, D).transpose(0, 2, 1, 3)
            ctx2d = ctx2d.reshape(B * S, H * D)

        # --- out_proj (RowParallelLinear): tiled Pallas matmul ---
        out = _pallas_linear(ctx2d.astype(cd), self._out_wT, self.out_b,
                             out_dtype=jnp.float32)              # (B*S, E)
        # TODO(synk): process-group all-reduce omitted (single-device group).
        if seqlen is None:
            return out.reshape(B, S, E)
        return out


# ---------------------------------- reference ---------------------------------

def _reference_forward(mha, x):
    B, S, E = x.shape
    H, D = mha.num_heads, mha.head_dim
    qkv = x.reshape(B * S, E) @ mha.Wqkv_w.T + mha.Wqkv_b
    qkv = qkv.reshape(B, S, 3, H, D)
    q, k, v = qkv[:, :, 0], qkv[:, :, 1], qkv[:, :, 2]
    scale = (mha.softmax_scale if mha.softmax_scale is not None
             else 1.0 / math.sqrt(D))
    scores = jnp.einsum('bthd,bshd->bhts', q, k * scale)
    if mha.causal:
        mask = jnp.triu(jnp.full((S, S), -10000.0, jnp.float32), 1)
        scores = scores + mask
    attn = jax.nn.softmax(scores, axis=-1)
    ctx = jnp.einsum('bhts,bshd->bthd', attn, v).reshape(B * S, E)
    return (ctx @ mha.out_w.T + mha.out_b).reshape(B, S, E)


# ------------------------------------- main ------------------------------------

if __name__ == "__main__":
    # Config A: tiny smoke test (head_dim=8 -> transpose-fallback attention
    # path), f32 compute for a tight-tolerance check against the reference.
    B, S, E, H = 2, 8, 32, 4
    kx, kp = jax.random.split(jax.random.PRNGKey(0))
    x = jax.random.normal(kx, (B, S, E), jnp.float32)

    mha = ParallelMHAPallas(E, H, causal=False, compute_dtype=jnp.float32, key=kp)
    out = jax.block_until_ready(mha(x))
    ref = _reference_forward(mha, x)
    assert out.shape == (B, S, E)
    assert jnp.allclose(out, ref, rtol=5e-3, atol=5e-3), "config A mismatch vs reference"

    # Config B: production path — bf16 MXU operands / f32 accumulation, causal,
    # head_dim=128 (no-transpose fused layout), multi-tile online softmax with
    # clamped zero-DMA causal KV tiles and masked/unmasked tile split.
    B2, S2, E2, H2 = 2, 512, 512, 4          # head_dim = 128
    kx2, kp2 = jax.random.split(jax.random.PRNGKey(1))
    x2 = jax.random.normal(kx2, (B2, S2, E2), jnp.float32)
    mha2 = ParallelMHAPallas(E2, H2, causal=True,
                             attn_block_q=128, attn_block_k=128, key=kp2)
    out2 = jax.block_until_ready(mha2(x2))
    ref2 = _reference_forward(mha2, x2)
    assert out2.shape == (B2, S2, E2)
    assert jnp.allclose(out2, ref2, rtol=5e-2, atol=5e-2), "config B mismatch vs reference"

    print("KERNEL_OK")
</pallas_src>

<mosaic_0001>
module attributes {stable_mosaic.version = 11 : i64} {
  func.func @_linear_kernel(%arg0: i32, %arg1: i32, %arg2: i32, %arg3: memref<16x32xf32, #tpu.memory_space<vmem>>, %arg4: memref<32x96xf32, #tpu.memory_space<vmem>>, %arg5: memref<1x96xf32, #tpu.memory_space<vmem>>, %arg6: memref<16x96xf32, #tpu.memory_space<vmem>>, %arg7: memref<16x96xf32, #tpu.memory_space<vmem>>) attributes {dimension_semantics = [#tpu.dimension_semantics<parallel>, #tpu.dimension_semantics<parallel>, #tpu.dimension_semantics<arbitrary>], iteration_bounds = array<i64: 1, 1, 1>, scalar_prefetch = 0 : i64, scratch_operands = 1 : i64, tpu.core_type = #tpu.core_type<tc>, window_params = [{transform_indices = @transform_0, window_bounds = array<i64: 16, 32>}, {transform_indices = @transform_1, window_bounds = array<i64: 32, 96>}, {transform_indices = @transform_2, window_bounds = array<i64: 1, 96>}, {transform_indices = @transform_3, window_bounds = array<i64: 16, 96>}]} {
    %c0_i32 = arith.constant 0 : i32
    %0 = arith.cmpi eq, %arg2, %c0_i32 : i32
    %1 = arith.extui %0 : i1 to i32
    %c0_i32_0 = arith.constant 0 : i32
    %2 = arith.cmpi ne, %1, %c0_i32_0 : i32
    scf.if %2 {
      %cst_10 = arith.constant 0.000000e+00 : f32
      %12 = vector.broadcast %cst_10 : f32 to vector<16x96xf32>
      %c0_11 = arith.constant 0 : index
      %c0_12 = arith.constant 0 : index
      %13 = vector.load %arg7[%c0_11, %c0_12] : memref<16x96xf32, #tpu.memory_space<vmem>>, vector<16x96xf32>
      tpu.vector_store %arg7[%c0_11, %c0_12], %12 {strides = array<i32>} : memref<16x96xf32, #tpu.memory_space<vmem>>, vector<16x96xf32>,
    } else {
    }
    %c0 = arith.constant 0 : index
    %c0_1 = arith.constant 0 : index
    %3 = vector.load %arg7[%c0, %c0_1] : memref<16x96xf32, #tpu.memory_space<vmem>>, vector<16x96xf32>
    %c0_2 = arith.constant 0 : index
    %c0_3 = arith.constant 0 : index
    %4 = vector.load %arg3[%c0_2, %c0_3] : memref<16x32xf32, #tpu.memory_space<vmem>>, vector<16x32xf32>
    %c0_4 = arith.constant 0 : index
    %c0_5 = arith.constant 0 : index
    %5 = vector.load %arg4[%c0_4, %c0_5] : memref<32x96xf32, #tpu.memory_space<vmem>>, vector<32x96xf32>
    %cst = arith.constant dense<0.000000e+00> : vector<16x96xf32>
    %6 = tpu.matmul %4, %5, %cst {dimension_numbers = #tpu.dot_dimension_numbers<[1], [0], [0], [1], [0, 0, 1, 1], [], []>} : vector<16x32xf32>, vector<32x96xf32>, vector<16x96xf32> -> vector<16x96xf32>
    %7 = arith.addf %3, %6 : vector<16x96xf32>
    %c0_6 = arith.constant 0 : index
    %c0_7 = arith.constant 0 : index
    %8 = vector.load %arg7[%c0_6, %c0_7] : memref<16x96xf32, #tpu.memory_space<vmem>>, vector<16x96xf32>
    tpu.vector_store %arg7[%c0_6, %c0_7], %7 {strides = array<i32>} : memref<16x96xf32, #tpu.memory_space<vmem>>, vector<16x96xf32>,
    %c0_i32_8 = arith.constant 0 : i32
    %9 = arith.cmpi eq, %arg2, %c0_i32_8 : i32
    %10 = arith.extui %9 : i1 to i32
    %c0_i32_9 = arith.constant 0 : i32
    %11 = arith.cmpi ne, %10, %c0_i32_9 : i32
    scf.if %11 {
      %c0_10 = arith.constant 0 : index
      %c0_11 = arith.constant 0 : index
      %12 = vector.load %arg7[%c0_10, %c0_11] : memref<16x96xf32, #tpu.memory_space<vmem>>, vector<16x96xf32>
      %c0_12 = arith.constant 0 : index
      %c0_13 = arith.constant 0 : index
      %13 = vector.load %arg5[%c0_12, %c0_13] : memref<1x96xf32, #tpu.memory_space<vmem>>, vector<1x96xf32>
      %14 = vector.broadcast %13 : vector<1x96xf32> to vector<16x96xf32>
      %15 = arith.addf %12, %14 : vector<16x96xf32>
      %c0_14 = arith.constant 0 : index
      %c0_15 = arith.constant 0 : index
      %16 = vector.load %arg6[%c0_14, %c0_15] : memref<16x96xf32, #tpu.memory_space<vmem>>, vector<16x96xf32>
      tpu.vector_store %arg6[%c0_14, %c0_15], %15 {strides = array<i32>} : memref<16x96xf32, #tpu.memory_space<vmem>>, vector<16x96xf32>,
    } else {
    }
    return
  }
  func.func @transform_0(%arg0: i32, %arg1: i32, %arg2: i32) -> (i32, i32) {
    %c0_i32 = arith.constant 0 : i32
    return %arg0, %arg2 : i32, i32
  }
  func.func @transform_1(%arg0: i32, %arg1: i32, %arg2: i32) -> (i32, i32) {
    %c0_i32 = arith.constant 0 : i32
    return %arg2, %arg1 : i32, i32
  }
  func.func @transform_2(%arg0: i32, %arg1: i32, %arg2: i32) -> (i32, i32) {
    %c0_i32 = arith.constant 0 : i32
    %c0_i32_0 = arith.constant 0 : i32
    return %c0_i32, %arg1 : i32, i32
  }
  func.func @transform_3(%arg0: i32, %arg1: i32, %arg2: i32) -> (i32, i32) {
    %c0_i32 = arith.constant 0 : i32
    return %arg0, %arg1 : i32, i32
  }
}

</mosaic_0001>

<llo_original>
// kernel: tpu_custom_call.1
$region0: #{tpu_custom_call.1}
  #allocation0 [shape = 'u32[]', space=smem, size = 0x4, offset = 0x4, fixed_abs, tag = 'smem constant byte address 0x4 - core index']
  #allocation1 [shape = 'u32[144,128]{1,0:T(1,128)}', space=vmem, size = 0x12000, scoped, tag = 'internal scratch']
  #allocation2 [shape = 'f32[16,96]{1,0:T(8,128)}', space=vmem, size = 0x2000, scoped, tag = 'scratch operand']
  %s0 = inlined_call_operand.hbm [shape: f32[16,32], index: 0, kind: input, shape index: {}]
  %s1 = inlined_call_operand.hbm [shape: f32[32,96], index: 1, kind: input, shape index: {}]
  %s2 = inlined_call_operand.vmem [shape: f32[1,96], index: 2, kind: input, shape index: {}]
  %s3 = inlined_call_operand.hbm [shape: f32[16,96], index: 3, kind: output, shape index: {}]
  %s4 = sld [smem:[#allocation0]]
  $region38: #{tpu_custom_call.1} parent=0
    _
  %s6 = ssub.s32 1, %s4
  %s7 = scalar_select 0, %s6, %s4
  $region1: #{tpu_custom_call.1} parent=0
    #allocation3 [shape = 'u8[8192]{0}', space=vmem, size = 0x2000, scoped, tag = 'input window, operand 0, single buffered']
    #allocation4 [shape = 's32[1]{0}', space=sflag, size = 0x4, scoped, tag = 'scoped memory for tpu_custom_call.1']
    #allocation5 [shape = 's32[1]{0}', space=sflag, size = 0x4, scoped, tag = 'scoped memory for tpu_custom_call.1']
    #allocation6 [shape = 'u8[16384]{0}', space=vmem, size = 0x4000, scoped, tag = 'input window, operand 1, single buffered']
    #allocation7 [shape = 's32[1]{0}', space=sflag, size = 0x4, scoped, tag = 'scoped memory for tpu_custom_call.1']
    #allocation8 [shape = 'u8[8192]{0}', space=vmem, size = 0x2000, scoped, tag = 'output window, operand 0, single buffered']
    %8 = vsyncpa [#allocation4], 0
    %9 = vsyncpa [#allocation7], 0
    %10 = vsyncpa [#allocation5], 0
    // Predicated region
    $region2: #{tpu_custom_call.1} parent=1 // pred_check
      _
    $region3: #{tpu_custom_call.1} parent=1 // pred_check_branch
      %12 = sbr.rel (0) target = $region5
    $region4: #{tpu_custom_call.1} parent=1 // pred_region
      %s14 = ssub.s32 256, 256
      %15 = vsyncadd [#allocation4], %s14
      %s16 = sshll.u32 [#allocation3], 4
      %s17 = int_to_ptr.vmem [resolvable:$true] %s16
      %22 = dma.hbm_to_vmem [thread:$0]  %s0, 256, %s17, [#allocation4], 128, 128, 8
    $region5: #{tpu_custom_call.1} parent=1 // pred_fallthru
      _
    // Predicated region
    $region6: #{tpu_custom_call.1} parent=1 // pred_check
      _
    $region7: #{tpu_custom_call.1} parent=1 // pred_check_branch
      %24 = sbr.rel (0) target = $region9
    $region8: #{tpu_custom_call.1} parent=1 // pred_region
      %s26 = ssub.s32 512, 512
      %27 = vsyncadd [#allocation7], %s26
      %s28 = sshll.u32 [#allocation6], 4
      %s29 = int_to_ptr.vmem [resolvable:$true] %s28
      %34 = dma.hbm_to_vmem [thread:$0]  %s1, 512, %s29, [#allocation7], 128, 128, 8
    $region9: #{tpu_custom_call.1} parent=1 // pred_fallthru
      _
    // Predicated region
    $region10: #{tpu_custom_call.1} parent=1 // pred_check
      _
    $region11: #{tpu_custom_call.1} parent=1 // pred_check_branch
      %36 = sbr.rel (0) target = $region13
    $region12: #{tpu_custom_call.1} parent=1 // pred_region
      _
    $region13: #{tpu_custom_call.1} parent=1 // pred_fallthru
      _
    // Predicated region
    $region14: #{tpu_custom_call.1} parent=1 // pred_check
      _
    $region15: #{tpu_custom_call.1} parent=1 // pred_check_branch
      %38 = sbr.rel (0) target = $region17
    $region16: #{tpu_custom_call.1} parent=1 // pred_region
      %39 = dma.done [#allocation4], 256
    $region17: #{tpu_custom_call.1} parent=1 // pred_fallthru
      _
    // Predicated region
    $region18: #{tpu_custom_call.1} parent=1 // pred_check
      _
    $region19: #{tpu_custom_call.1} parent=1 // pred_check_branch
      %41 = sbr.rel (0) target = $region21
    $region20: #{tpu_custom_call.1} parent=1 // pred_region
      %42 = dma.done [#allocation7], 512
    $region21: #{tpu_custom_call.1} parent=1 // pred_fallthru
      _
    %p43 = scmp.eq.s32.totalorder 0, 0
    // Predicated region
    $region22: #{tpu_custom_call.1} parent=1 // pred_check
      %p44 = pneg %p43
    $region23: #{tpu_custom_call.1} parent=1 // pred_check_branch
      %46 = sbr.rel (%p44) target = $region25
    $region24: #{tpu_custom_call.1} parent=1 // pred_region
      %vm47 = vcmask 785408
      %48 = vst.msk [vmem:[#allocation2] sm:$0xff] %vm47, 0.0
      %49 = vst.msk [vmem:[#allocation2 + $0x8] sm:$0xff] %vm47, 0.0
    $region25: #{tpu_custom_call.1} parent=1 // pred_fallthru
      _
    %v50 = vld [vmem:[#allocation2] sm:$0xff]
    %v51 = vld [vmem:[#allocation2 + $0x8] sm:$0xff]
    %v52 = vld [vmem:[#allocation3] sm:$0xff]
    %v53 = vld [vmem:[#allocation3 + $0x8] sm:$0xff]
    %v54 = vld [vmem:[#allocation6] sm:$0xff]
    %v55 = vld [vmem:[#allocation6 + $0x8] sm:$0xff]
    %v56 = vld [vmem:[#allocation6 + $0x10] sm:$0xff]
    %v57 = vld [vmem:[#allocation6 + $0x18] sm:$0xff]
    %vm58 = vcmask 261120
    %v60 = vsel %vm58, %v52, 0
    %v63 = vsel %vm58, %v53, 0
    %65 = vmatprep.subr.mxu0 0.0
    %66 = vmatpush1.msra.mxu0 %v54
    %67 = vmatprep.subr.mxu0 0.0
    %68 = vmatpush1.msra.mxu0 %v55
    %69 = vmatprep.subr.mxu0 0.0
    %70 = vmatpush1.msra.mxu0 %v56
    %71 = vmatprep.subr.mxu0 0.0
    %72 = vmatpush1.msra.mxu0 %v57
    %73 = vmatprep.subr.mxu0 0.0
    %74 = vmatpush1.msra.mxu0 0.0
    %75 = vmatprep.subr.mxu0 0.0
    %76 = vmatpush1.msra.mxu0 0.0
    %77 = vmatprep.subr.mxu0 0.0
    %78 = vmatpush1.msra.mxu0 0.0
    %79 = vmatprep.subr.mxu0 0.0
    %80 = vmatpush1.msra.mxu0 0.0
    %81 = vmatprep.subr.mxu0 0.0
    %82 = vmatpush1.msra.mxu0 0.0
    %83 = vmatprep.subr.mxu0 0.0
    %84 = vmatpush1.msra.mxu0 0.0
    %85 = vmatprep.subr.mxu0 0.0
    %86 = vmatpush1.msra.mxu0 0.0
    %87 = vmatprep.subr.mxu0 0.0
    %88 = vmatpush1.msra.mxu0 0.0
    %89 = vmatprep.subr.mxu0 0.0
    %90 = vmatpush1.msra.mxu0 0.0
    %91 = vmatprep.subr.mxu0 0.0
    %92 = vmatpush1.msra.mxu0 0.0
    %93 = vmatprep.subr.mxu0 0.0
    %94 = vmatpush1.msra.mxu0 0.0
    %95 = vmatprep.subr.mxu0 0.0
    %96 = vmatpush1.msra.mxu0 0.0
    %97 = vmatprep.subr.mxu0 0.0
    %98 = vmatpush1.msra.mxu0 0.0
    %99 = vmatprep.subr.mxu0 0.0
    %100 = vmatpush1.msra.mxu0 0.0
    %101 = vmatprep.subr.mxu0 0.0
    %102 = vmatpush1.msra.mxu0 0.0
    %103 = vmatprep.subr.mxu0 0.0
    %104 = vmatpush1.msra.mxu0 0.0
    %105 = vmatprep.subr.mxu0 0.0
    %106 = vmatpush1.msra.mxu0 0.0
    %107 = vmatprep.subr.mxu0 0.0
    %108 = vmatpush1.msra.mxu0 0.0
    %109 = vmatprep.subr.mxu0 0.0
    %110 = vmatpush1.msra.mxu0 0.0
    %111 = vmatprep.subr.mxu0 0.0
    %112 = vmatpush1.msra.mxu0 0.0
    %113 = vmatprep.subr.mxu0 0.0
    %114 = vmatpush1.msra.mxu0 0.0
    %115 = vmatprep.subr.mxu0 0.0
    %116 = vmatpush1.msra.mxu0 0.0
    %117 = vmatprep.subr.mxu0 0.0
    %118 = vmatpush1.msra.mxu0 0.0
    %119 = vmatprep.subr.mxu0 0.0
    %120 = vmatpush1.msra.mxu0 0.0
    %121 = vmatprep.subr.mxu0 0.0
    %122 = vmatpush1.msra.mxu0 0.0
    %123 = vmatprep.subr.mxu0 0.0
    %124 = vmatpush1.msra.mxu0 0.0
    %125 = vmatprep.subr.mxu0 0.0
    %126 = vmatpush1.msra.mxu0 0.0
    %127 = vmatprep.subr.mxu0 0.0
    %128 = vmatpush1.msra.mxu0 0.0
    %129 = vmatprep.mubr.f32.mxu0 0.0
    %130 = vmatmul.mubr.f32.gmra.mrb[0].mxu0 %v60
    %v131 = vpop.f32.mrb[0].mxu0
    %v132 = vadd.f32 0.0, %v131
    %v133 = vpop.f32.mrb[0].mxu0
    %134 = vmatprep.mubr.f32.mxu0 0.0
    %135 = vmatmul.mubr.f32.gmra.mrb[0].mxu0 %v63
    %v136 = vpop.f32.mrb[0].mxu0
    %v137 = vadd.f32 0.0, %v136
    %v138 = vpop.f32.mrb[0].mxu0
    %139 = vdwg.mxu0
    %v140 = vadd.f32 %v50, %v132
    %v141 = vadd.f32 %v51, %v137
    %vm142 = vcmask 785408
    %143 = vst.msk [vmem:[#allocation2] sm:$0xff] %vm142, %v140
    %144 = vst.msk [vmem:[#allocation2 + $0x8] sm:$0xff] %vm142, %v141
    // Predicated region
    $region26: #{tpu_custom_call.1} parent=1 // pred_check
      %p145 = pneg %p43
    $region27: #{tpu_custom_call.1} parent=1 // pred_check_branch
      %147 = sbr.rel (%p145) target = $region29
    $region28: #{tpu_custom_call.1} parent=1 // pred_region
      %v148 = vld [vmem:[#allocation2] sm:$0xff]
      %v149 = vld [vmem:[#allocation2 + $0x8] sm:$0xff]
      %v150 = vld [vmem:[%s2] sm:$0x1]
      %v152 = vlaneseq
      %v153 = vshrl.u32 %v152, 7
      %v154 = vsub.s32 0, %v153
      %v155 = vrot.slane %v150, %v154
      %v157 = vadd.f32 %v148, %v155
      %v158 = vadd.f32 %v149, %v155
      %159 = vst.msk [vmem:[#allocation8] sm:$0xff] %vm142, %v157
      %160 = vst.msk [vmem:[#allocation8 + $0x8] sm:$0xff] %vm142, %v158
    $region29: #{tpu_custom_call.1} parent=1 // pred_fallthru
      _
    // Predicated region
    $region30: #{tpu_custom_call.1} parent=1 // pred_check
      _
    $region31: #{tpu_custom_call.1} parent=1 // pred_check_branch
      %162 = sbr.rel (0) target = $region33
    $region32: #{tpu_custom_call.1} parent=1 // pred_region
      %s164 = ssub.s32 256, 256
      %165 = vsyncadd [#allocation5], %s164
      %s166 = sshll.u32 [#allocation8], 4
      %s167 = int_to_ptr.vmem [resolvable:$true] %s166
      %172 = dma.vmem_to_hbm [thread:$0]  %s167, 256, %s3, [#allocation5], 128, 128, 8
    $region33: #{tpu_custom_call.1} parent=1 // pred_fallthru
      _
    // Predicated region
    $region34: #{tpu_custom_call.1} parent=1 // pred_check
      _
    $region35: #{tpu_custom_call.1} parent=1 // pred_check_branch
      %174 = sbr.rel (0) target = $region37
    $region36: #{tpu_custom_call.1} parent=1 // pred_region
      %175 = dma.done [#allocation5], 256
    $region37: #{tpu_custom_call.1} parent=1 // pred_fallthru
      _
    %176 = vsyncpa [#allocation4], 1
    %177 = vsyncpa [#allocation7], 1
    %178 = vsyncpa [#allocation5], 1

</llo_original>
